<compile_context>
chip_gen: v7x
topology: tpu7x:2x2x1
jax: 0.10.0
libtpu: 0.0.40
codegen_flags: <defaults>
</compile_context>

<pallas_src>
import jax
import jax.numpy as jnp
from jax import lax
from jax.experimental import pallas as pl
from jax.experimental.pallas import tpu as pltpu

_LANES = 128
_CHUNK_ROWS = 512                    # in-kernel streaming chunk (512x128 f32 = 256 KiB)
_MAX_BLOCK_BYTES = 4 * 1024 * 1024   # per-input HBM->VMEM block (double-buffered)
_PAD_LOGIT = -1.0e4                  # sigmoid(pad)==0 and log1p(exp(-|pad|))==0 in f32


def bce_iou_loss(pred, target):
    """pred, target: (N, C, H, W) arrays (NCHW).  bf16 or f32 inputs accepted;
    they stay in native dtype in HBM and are cast to f32 inside the kernel."""
    N = pred.shape[0]
    F = 1
    for dim in pred.shape[1:]:
        F *= dim

    rows = pl.cdiv(F, _LANES)

    # ---- lane-dense layout (rows, 128); pad only when F is not lane-aligned ----
    if rows * _LANES != F:
        # TODO(synk): rare path (F % 128 != 0) still materializes one minimally
        # padded copy (< 128 extra elements per sample).
        pad = rows * _LANES - F
        pred2 = jnp.pad(pred.reshape(N, F), ((0, 0), (0, pad)),
                        constant_values=_PAD_LOGIT)
        targ2 = jnp.pad(target.reshape(N, F), ((0, 0), (0, pad)),
                        constant_values=0.0)
    else:
        pred2 = pred.reshape(N, F)          # pure reshape: no HBM copy
        targ2 = target.reshape(N, F)
    pred3 = pred2.reshape(N, rows, _LANES)
    targ3 = targ2.reshape(N, rows, _LANES)

    # ---- tiling: big blocks, streamed in CHUNK-row slices inside the kernel ----
    itemsize = max(jnp.dtype(pred.dtype).itemsize, jnp.dtype(target.dtype).itemsize)
    max_block_rows = max(
        _CHUNK_ROWS,
        (_MAX_BLOCK_BYTES // (_LANES * itemsize)) // _CHUNK_ROWS * _CHUNK_ROWS)
    if rows <= _CHUNK_ROWS:
        block_rows = rows                    # block == full dim (no 8-row constraint)
    else:
        block_rows = min(max_block_rows, (rows // _CHUNK_ROWS) * _CHUNK_ROWS)
    chunk = min(_CHUNK_ROWS, block_rows)
    n_chunks = block_rows // chunk           # exact by construction
    n_col = pl.cdiv(rows, block_rows)
    needs_mask = (rows % block_rows) != 0    # ragged last row-tile?

    # Split row-tiles into two accumulator halves when possible so both v7x
    # TensorCores get work even when N is tiny.  No effect on v5e/v6e.
    n_halves = 2 if (n_col >= 2 and n_col % 2 == 0) else 1
    n_col_half = n_col // n_halves

    def kernel(pred_ref, targ_ref, out_ref):
        h = pl.program_id(1)
        c = pl.program_id(2)

        @pl.when(c == 0)
        def _init():
            out_ref[...] = jnp.zeros_like(out_ref)

        tile_row0 = (h * n_col_half + c) * block_rows

        def chunk_body(ci, carry):
            bce_a, int_a, p_a, t_a = carry
            r0 = pl.multiple_of(ci * chunk, chunk)
            x = pred_ref[:, pl.ds(r0, chunk), :].astype(jnp.float32)
            t = targ_ref[:, pl.ds(r0, chunk), :].astype(jnp.float32)
            if needs_mask:
                # Mask BEFORE exp/log1p so garbage OOB rows contribute exactly 0.
                rid = tile_row0 + r0 + lax.broadcasted_iota(
                    jnp.int32, (1, chunk, _LANES), 1)
                valid = rid < rows
                x = jnp.where(valid, x, _PAD_LOGIT)
                t = jnp.where(valid, t, 0.0)
            # One EUP exp per element feeds the stable BCE log term AND sigmoid.
            e = jnp.exp(-jnp.abs(x))
            bce_elem = jnp.maximum(x, 0.0) - x * t + jnp.log1p(e)
            den = 1.0 + e
            r = pl.reciprocal(den, approx=True)
            r = r * (2.0 - den * r)              # one Newton step (~1e-7 rel err)
            p = jnp.where(x >= 0.0, r, e * r)    # sigmoid(x)
            return (bce_a + jnp.sum(bce_elem, axis=1),
                    int_a + jnp.sum(p * t, axis=1),
                    p_a + jnp.sum(p, axis=1),
                    t_a + jnp.sum(t, axis=1))

        zero = jnp.zeros((1, _LANES), jnp.float32)
        bce_s, int_s, p_s, t_s = lax.fori_loop(
            0, n_chunks, chunk_body, (zero, zero, zero, zero),
            unroll=2 if (n_chunks > 1 and n_chunks % 2 == 0) else 1)

        # Pack the four (1,128) lane-partials into one aligned (8,128) update.
        rowid = lax.broadcasted_iota(jnp.int32, (8, _LANES), 0)
        upd = (jnp.where(rowid == 0, bce_s, 0.0)
               + jnp.where(rowid == 1, int_s, 0.0)
               + jnp.where(rowid == 2, p_s, 0.0)
               + jnp.where(rowid == 3, t_s, 0.0))
        out_ref[...] += upd[None, None, :, :]

    in_spec = pl.BlockSpec((1, block_rows, _LANES),
                           lambda b, h, c: (b, h * n_col_half + c, 0))
    out_spec = pl.BlockSpec((1, 1, 8, _LANES), lambda b, h, c: (b, h, 0, 0))

    parts = pl.pallas_call(
        kernel,
        out_shape=jax.ShapeDtypeStruct((N, n_halves, 8, _LANES), jnp.float32),
        grid_spec=pltpu.PrefetchScalarGridSpec(
            num_scalar_prefetch=0,
            grid=(N, n_halves, n_col_half),
            in_specs=[in_spec, in_spec],
            out_specs=out_spec,
        ),
        compiler_params=pltpu.CompilerParams(
            dimension_semantics=("parallel", "parallel", "arbitrary"),
            vmem_limit_bytes=40 * 1024 * 1024,
        ),
    )(pred3, targ3)

    # Tiny finalize in plain JAX: cross-lane/half reduce, per-sample IoU ratio,
    # weighted combination.  Divide BCE by the TRUE element count.
    per_sample = jnp.sum(parts, axis=(1, 3))                 # (N, 8); rows 0..3 used
    bce_mean = jnp.sum(per_sample[:, 0]) / jnp.float32(N * F)
    inter, psum, tsum = per_sample[:, 1], per_sample[:, 2], per_sample[:, 3]
    smooth = jnp.float32(1.0)
    iou = (inter + smooth) / (psum + tsum - inter + smooth)
    soft_iou = jnp.float32(1.0) - jnp.mean(iou)
    return jnp.float32(1.5) * bce_mean + soft_iou


def _reference_bce_iou(pred, target):
    x = pred.astype(jnp.float32)
    t = target.astype(jnp.float32)
    bce = jnp.mean(jnp.maximum(x, 0.0) - x * t + jnp.log1p(jnp.exp(-jnp.abs(x))))
    p = jax.nn.sigmoid(x)
    axes = tuple(range(1, x.ndim))
    inter = jnp.sum(p * t, axis=axes)
    psum = jnp.sum(p, axis=axes)
    tsum = jnp.sum(t, axis=axes)
    smooth = 1.0
    iou = (inter + smooth) / (psum + tsum - inter + smooth)
    soft_iou = 1.0 - jnp.mean(iou)
    return 1.5 * bce + 1.0 * soft_iou


if __name__ == "__main__":
    loss_fn = jax.jit(bce_iou_loss)
    key = jax.random.PRNGKey(0)

    # --- main small test: (2, 4, 16, 16), single tile, no masking ---
    k1, k2, k3, k4, k5, k6 = jax.random.split(key, 6)
    N, C, H, W = 2, 4, 16, 16
    pred = jax.random.normal(k1, (N, C, H, W), dtype=jnp.float32)
    target = (jax.random.uniform(k2, (N, C, H, W)) > 0.7).astype(jnp.float32)
    loss = loss_fn(pred, target)
    jax.block_until_ready(loss)
    ref = _reference_bce_iou(pred, target)
    assert jnp.allclose(loss, ref, rtol=1e-5, atol=1e-5), (loss, ref)

    # --- secondary test: exercises ragged row-tile mask, 2-way tile split and
    #     the multi-chunk in-kernel streaming loop (N=1, 384x384) ---
    pred_b = jax.random.normal(k3, (1, 1, 384, 384), dtype=jnp.float32)
    target_b = (jax.random.uniform(k4, (1, 1, 384, 384)) > 0.7).astype(jnp.float32)
    loss_b = loss_fn(pred_b, target_b)
    ref_b = _reference_bce_iou(pred_b, target_b)
    assert jnp.allclose(loss_b, ref_b, rtol=1e-4, atol=1e-4), (loss_b, ref_b)

    # --- tiny test: exercises the minimal lane-pad path (F % 128 != 0) ---
    pred_c = jax.random.normal(k5, (2, 3, 5, 7), dtype=jnp.float32)
    target_c = (jax.random.uniform(k6, (2, 3, 5, 7)) > 0.5).astype(jnp.float32)
    loss_c = loss_fn(pred_c, target_c)
    ref_c = _reference_bce_iou(pred_c, target_c)
    assert jnp.allclose(loss_c, ref_c, rtol=1e-5, atol=1e-5), (loss_c, ref_c)

    print("KERNEL_OK")
</pallas_src>

<mosaic_0001>
module attributes {stable_mosaic.version = 11 : i64} {
  func.func @kernel(%arg0: i32, %arg1: i32, %arg2: i32, %arg3: memref<1x8x128xf32, #tpu.memory_space<vmem>>, %arg4: memref<1x8x128xf32, #tpu.memory_space<vmem>>, %arg5: memref<1x1x8x128xf32, #tpu.memory_space<vmem>>) attributes {dimension_semantics = [#tpu.dimension_semantics<parallel>, #tpu.dimension_semantics<parallel>, #tpu.dimension_semantics<arbitrary>], iteration_bounds = array<i64: 2, 1, 1>, scalar_prefetch = 0 : i64, scratch_operands = 0 : i64, tpu.core_type = #tpu.core_type<tc>, window_params = [{transform_indices = @transform_0, window_bounds = array<i64: 1, 8, 128>}, {transform_indices = @transform_1, window_bounds = array<i64: 1, 8, 128>}, {transform_indices = @transform_2, window_bounds = array<i64: 1, 1, 8, 128>}]} {
    %c0_i32 = arith.constant 0 : i32
    %0 = arith.cmpi eq, %arg2, %c0_i32 : i32
    %1 = arith.extui %0 : i1 to i32
    %c0_i32_0 = arith.constant 0 : i32
    %2 = arith.cmpi ne, %1, %c0_i32_0 : i32
    scf.if %2 {
      %cst_28 = arith.constant 0.000000e+00 : f32
      %72 = vector.broadcast %cst_28 : f32 to vector<1x1x8x128xf32>
      %c0_29 = arith.constant 0 : index
      %c0_30 = arith.constant 0 : index
      %c0_31 = arith.constant 0 : index
      %c0_32 = arith.constant 0 : index
      %73 = vector.load %arg5[%c0_29, %c0_30, %c0_31, %c0_32] : memref<1x1x8x128xf32, #tpu.memory_space<vmem>>, vector<1x1x8x128xf32>
      tpu.vector_store %arg5[%c0_29, %c0_30, %c0_31, %c0_32], %72 {strides = array<i32>} : memref<1x1x8x128xf32, #tpu.memory_space<vmem>>, vector<1x1x8x128xf32>,
    } else {
    }
    %cst = arith.constant 0.000000e+00 : f32
    %3 = vector.broadcast %cst : f32 to vector<1x128xf32>
    %c0_i32_1 = arith.constant 0 : i32
    %c8_i32 = arith.constant 8 : i32
    %4 = arith.muli %c0_i32_1, %c8_i32 : i32
    %5 = tpu.assume_multiple %4, 8 : i32
    %c0 = arith.constant 0 : index
    %6 = arith.index_cast %5 : i32 to index
    %c0_2 = arith.constant 0 : index
    %7 = vector.load %arg3[%c0, %6, %c0_2] : memref<1x8x128xf32, #tpu.memory_space<vmem>>, vector<1x8x128xf32>
    %c0_3 = arith.constant 0 : index
    %8 = arith.index_cast %5 : i32 to index
    %c0_4 = arith.constant 0 : index
    %9 = vector.load %arg4[%c0_3, %8, %c0_4] : memref<1x8x128xf32, #tpu.memory_space<vmem>>, vector<1x8x128xf32>
    %10 = math.absf %7 : vector<1x8x128xf32>
    %cst_5 = arith.constant 0.000000e+00 : f32
    %11 = vector.broadcast %cst_5 : f32 to vector<1x8x128xf32>
    %12 = arith.subf %11, %10 : vector<1x8x128xf32>
    %13 = math.exp %12 : vector<1x8x128xf32>
    %cst_6 = arith.constant 0.000000e+00 : f32
    %14 = vector.broadcast %cst_6 : f32 to vector<1x8x128xf32>
    %15 = arith.maximumf %7, %14 : vector<1x8x128xf32>
    %16 = arith.mulf %7, %9 : vector<1x8x128xf32>
    %17 = arith.subf %15, %16 : vector<1x8x128xf32>
    %18 = math.log1p %13 : vector<1x8x128xf32>
    %19 = arith.addf %17, %18 : vector<1x8x128xf32>
    %cst_7 = arith.constant 1.000000e+00 : f32
    %20 = vector.broadcast %cst_7 : f32 to vector<1x8x128xf32>
    %21 = arith.addf %20, %13 : vector<1x8x128xf32>
    %22 = tpu.reciprocal %21 {approx = true} : vector<1x8x128xf32> -> vector<1x8x128xf32>
    %23 = arith.mulf %21, %22 : vector<1x8x128xf32>
    %cst_8 = arith.constant 2.000000e+00 : f32
    %24 = vector.broadcast %cst_8 : f32 to vector<1x8x128xf32>
    %25 = arith.subf %24, %23 : vector<1x8x128xf32>
    %26 = arith.mulf %22, %25 : vector<1x8x128xf32>
    %cst_9 = arith.constant 0.000000e+00 : f32
    %27 = vector.broadcast %cst_9 : f32 to vector<1x8x128xf32>
    %28 = arith.cmpf oge, %7, %27 : vector<1x8x128xf32>
    %29 = arith.mulf %13, %26 : vector<1x8x128xf32>
    %30 = arith.select %28, %26, %29 : vector<1x8x128xi1>, vector<1x8x128xf32>
    %cst_10 = arith.constant dense<0.000000e+00> : vector<1x128xf32>
    %31 = vector.multi_reduction <add>, %19, %cst_10 [1] : vector<1x8x128xf32> to vector<1x128xf32>
    %32 = arith.addf %3, %31 : vector<1x128xf32>
    %33 = arith.mulf %30, %9 : vector<1x8x128xf32>
    %cst_11 = arith.constant dense<0.000000e+00> : vector<1x128xf32>
    %34 = vector.multi_reduction <add>, %33, %cst_11 [1] : vector<1x8x128xf32> to vector<1x128xf32>
    %35 = arith.addf %3, %34 : vector<1x128xf32>
    %cst_12 = arith.constant dense<0.000000e+00> : vector<1x128xf32>
    %36 = vector.multi_reduction <add>, %30, %cst_12 [1] : vector<1x8x128xf32> to vector<1x128xf32>
    %37 = arith.addf %3, %36 : vector<1x128xf32>
    %cst_13 = arith.constant dense<0.000000e+00> : vector<1x128xf32>
    %38 = vector.multi_reduction <add>, %9, %cst_13 [1] : vector<1x8x128xf32> to vector<1x128xf32>
    %39 = arith.addf %3, %38 : vector<1x128xf32>
    %c1_i32 = arith.constant 1 : i32
    %40 = tpu.iota {dimensions = array<i32: 0>} : vector<8x128xi32>
    %c0_i32_14 = arith.constant 0 : i32
    %41 = vector.broadcast %c0_i32_14 : i32 to vector<8x128xi32>
    %42 = arith.cmpi eq, %40, %41 : vector<8x128xi32>
    %cst_15 = arith.constant 0.000000e+00 : f32
    %43 = vector.shape_cast %32 : vector<1x128xf32> to vector<1x128xf32>
    %44 = vector.broadcast %43 : vector<1x128xf32> to vector<8x128xf32>
    %45 = vector.broadcast %cst_15 : f32 to vector<8x128xf32>
    %46 = arith.select %42, %44, %45 : vector<8x128xi1>, vector<8x128xf32>
    %c1_i32_16 = arith.constant 1 : i32
    %47 = vector.broadcast %c1_i32_16 : i32 to vector<8x128xi32>
    %48 = arith.cmpi eq, %40, %47 : vector<8x128xi32>
    %cst_17 = arith.constant 0.000000e+00 : f32
    %49 = vector.shape_cast %35 : vector<1x128xf32> to vector<1x128xf32>
    %50 = vector.broadcast %49 : vector<1x128xf32> to vector<8x128xf32>
    %51 = vector.broadcast %cst_17 : f32 to vector<8x128xf32>
    %52 = arith.select %48, %50, %51 : vector<8x128xi1>, vector<8x128xf32>
    %53 = arith.addf %46, %52 : vector<8x128xf32>
    %c2_i32 = arith.constant 2 : i32
    %54 = vector.broadcast %c2_i32 : i32 to vector<8x128xi32>
    %55 = arith.cmpi eq, %40, %54 : vector<8x128xi32>
    %cst_18 = arith.constant 0.000000e+00 : f32
    %56 = vector.shape_cast %37 : vector<1x128xf32> to vector<1x128xf32>
    %57 = vector.broadcast %56 : vector<1x128xf32> to vector<8x128xf32>
    %58 = vector.broadcast %cst_18 : f32 to vector<8x128xf32>
    %59 = arith.select %55, %57, %58 : vector<8x128xi1>, vector<8x128xf32>
    %60 = arith.addf %53, %59 : vector<8x128xf32>
    %c3_i32 = arith.constant 3 : i32
    %61 = vector.broadcast %c3_i32 : i32 to vector<8x128xi32>
    %62 = arith.cmpi eq, %40, %61 : vector<8x128xi32>
    %cst_19 = arith.constant 0.000000e+00 : f32
    %63 = vector.shape_cast %39 : vector<1x128xf32> to vector<1x128xf32>
    %64 = vector.broadcast %63 : vector<1x128xf32> to vector<8x128xf32>
    %65 = vector.broadcast %cst_19 : f32 to vector<8x128xf32>
    %66 = arith.select %62, %64, %65 : vector<8x128xi1>, vector<8x128xf32>
    %67 = arith.addf %60, %66 : vector<8x128xf32>
    %c0_20 = arith.constant 0 : index
    %c0_21 = arith.constant 0 : index
    %c0_22 = arith.constant 0 : index
    %c0_23 = arith.constant 0 : index
    %68 = vector.load %arg5[%c0_20, %c0_21, %c0_22, %c0_23] : memref<1x1x8x128xf32, #tpu.memory_space<vmem>>, vector<1x1x8x128xf32>
    %69 = vector.shape_cast %67 : vector<8x128xf32> to vector<1x1x8x128xf32>
    %70 = arith.addf %68, %69 : vector<1x1x8x128xf32>
    %c0_24 = arith.constant 0 : index
    %c0_25 = arith.constant 0 : index
    %c0_26 = arith.constant 0 : index
    %c0_27 = arith.constant 0 : index
    %71 = vector.load %arg5[%c0_24, %c0_25, %c0_26, %c0_27] : memref<1x1x8x128xf32, #tpu.memory_space<vmem>>, vector<1x1x8x128xf32>
    tpu.vector_store %arg5[%c0_24, %c0_25, %c0_26, %c0_27], %70 {strides = array<i32>} : memref<1x1x8x128xf32, #tpu.memory_space<vmem>>, vector<1x1x8x128xf32>,
    return
  }
  func.func @transform_0(%arg0: i32, %arg1: i32, %arg2: i32) -> (i32, i32, i32) {
    %c1_i32 = arith.constant 1 : i32
    %0 = arith.muli %arg1, %c1_i32 : i32
    %1 = arith.addi %0, %arg2 : i32
    %c0_i32 = arith.constant 0 : i32
    %c0_i32_0 = arith.constant 0 : i32
    return %arg0, %1, %c0_i32 : i32, i32, i32
  }
  func.func @transform_1(%arg0: i32, %arg1: i32, %arg2: i32) -> (i32, i32, i32) {
    %c1_i32 = arith.constant 1 : i32
    %0 = arith.muli %arg1, %c1_i32 : i32
    %1 = arith.addi %0, %arg2 : i32
    %c0_i32 = arith.constant 0 : i32
    %c0_i32_0 = arith.constant 0 : i32
    return %arg0, %1, %c0_i32 : i32, i32, i32
  }
  func.func @transform_2(%arg0: i32, %arg1: i32, %arg2: i32) -> (i32, i32, i32, i32) {
    %c0_i32 = arith.constant 0 : i32
    %c0_i32_0 = arith.constant 0 : i32
    %c0_i32_1 = arith.constant 0 : i32
    return %arg0, %arg1, %c0_i32, %c0_i32_0 : i32, i32, i32, i32
  }
}

</mosaic_0001>

<llo_original>
// kernel: bce_iou_loss.1
$region0: #{bce_iou_loss.1}
  #allocation0 [shape = 'u32[]', space=smem, size = 0x4, offset = 0x4, fixed_abs, tag = 'smem constant byte address 0x4 - core index']
  #allocation1 [shape = 'u32[144,128]{1,0:T(1,128)}', space=vmem, size = 0x12000, scoped, tag = 'internal scratch']
  %s0 = inlined_call_operand.vmem [shape: f32[2,8,128], index: 0, kind: input, shape index: {}]
  %s1 = inlined_call_operand.vmem [shape: f32[2,8,128], index: 1, kind: input, shape index: {}]
  %s2 = inlined_call_operand.vmem [shape: f32[2,1,8,128], index: 2, kind: output, shape index: {}]
  %s3 = sld [smem:[#allocation0]]
  $region45: #{bce_iou_loss.1} parent=0
    _
  %s5 = ssub.s32 1, %s3
  %s6 = scalar_select 0, %s5, %s3
  loop: start=0, step=1, limit=4
  $region2: #{bce_iou_loss.1} parent=0 // loop_pre_header
    _
  $region3: #{bce_iou_loss.1} parent=0 // loop_header
    %s8 = sphi 0, %s12
    %p9 = scmp.ge.s32.totalorder %s8, 4
    %s15 = sphi 0, %s34
    %s16 = sphi 0, %s30
    %s17 = sphi 0, %s26
    %s18 = sphi 0, %s15
    %s19 = sphi 0, %s16
    %s20 = sphi 0, %s17
    %s21 = sphi 0, %s18
    %s22 = sphi 0, %s19
    %s23 = sphi 0, %s20
    %s41 = sphi 0, %s43
    %s44 = sphi 0, %s41
    %s45 = sphi 0, %s44
    %s61 = sphi 0, %s45
    %s71 = sphi 0, %s73
    %s74 = sphi 0, %s71
    %s75 = sphi 0, %s74
    %s91 = sphi 0, %s75
    %s99 = sphi 0, %s101
    %s102 = sphi 0, %s99
    %s103 = sphi 0, %s102
    %s119 = sphi 0, %s103
  $region4: #{bce_iou_loss.1} parent=0 // loop_header_branch
    %11 = sbr.rel (%p9) target = $region8
  $region5: #{bce_iou_loss.1} parent=0 // loop_body
    %s13 = ssub.s32 %s8, 1
    %s14 = ssub.s32 %s8, 2
    %s24 = sadd.s32 1, %s17
    %p25 = scmp.ge.s32.totalorder %s24, 1
    %s26 = scalar_select %p25, 0, %s24
    %s27 = sadd.s32 1, %s16
    %s28 = scalar_select %p25, %s27, %s16
    %p29 = scmp.ge.s32.totalorder %s28, 1
    %s30 = scalar_select %p29, 0, %s28
    %s31 = sadd.s32 1, %s15
    %s32 = scalar_select %p29, %s31, %s15
    %p33 = scmp.ge.s32.totalorder %s32, 2
    %s34 = scalar_select %p33, 0, %s32
    %s35 = sadd.s32 %s16, %s17
    %s36 = sadd.s32 %s30, %s26
    %s37 = ssub.s32 %s15, %s34
    %s38 = ssub.s32 %s35, %s36
    %s39 = sor.u32 %s37, %s38
    %p40 = scmp.eq.s32.totalorder %s39, 0
    %s42 = sadd.s32 %s41, 1
    %s43 = scalar_select %p40, %s41, %s42
    %p46 = pneg %p40
    %p47 = scmp.eq.s32.totalorder %s8, 1
    %p48 = por %p46, %p47
    %p49 = scmp.ne.s32.totalorder %s41, %s44
    %p50 = scmp.eq.s32.totalorder %s8, 0
    %p51 = por %p49, %p50
    %p52 = scmp.ne.s32.totalorder %s41, %s44
    %p53 = scmp.eq.s32.totalorder %s13, 1
    %p54 = por %p52, %p53
    %p55 = scmp.ne.s32.totalorder %s44, %s45
    %p56 = scmp.eq.s32.totalorder %s13, 0
    %p57 = por %p55, %p56
    %p58 = scmp.ne.s32.totalorder %s44, %s45
    %p59 = scmp.eq.s32.totalorder %s14, 1
    %p60 = por %p58, %p59
    %p62 = scmp.ne.s32.totalorder %s45, %s61
    %p63 = scmp.eq.s32.totalorder %s14, 0
    %p64 = por %p62, %p63
    %s65 = sadd.s32 %s16, %s17
    %s66 = sadd.s32 %s30, %s26
    %s67 = ssub.s32 %s15, %s34
    %s68 = ssub.s32 %s65, %s66
    %s69 = sor.u32 %s67, %s68
    %p70 = scmp.eq.s32.totalorder %s69, 0
    %s72 = sadd.s32 %s71, 1
    %s73 = scalar_select %p70, %s71, %s72
    %p76 = pneg %p70
    %p77 = scmp.eq.s32.totalorder %s8, 1
    %p78 = por %p76, %p77
    %p79 = scmp.ne.s32.totalorder %s71, %s74
    %p80 = scmp.eq.s32.totalorder %s8, 0
    %p81 = por %p79, %p80
    %p82 = scmp.ne.s32.totalorder %s71, %s74
    %p83 = scmp.eq.s32.totalorder %s13, 1
    %p84 = por %p82, %p83
    %p85 = scmp.ne.s32.totalorder %s74, %s75
    %p86 = scmp.eq.s32.totalorder %s13, 0
    %p87 = por %p85, %p86
    %p88 = scmp.ne.s32.totalorder %s74, %s75
    %p89 = scmp.eq.s32.totalorder %s14, 1
    %p90 = por %p88, %p89
    %p92 = scmp.ne.s32.totalorder %s75, %s91
    %p93 = scmp.eq.s32.totalorder %s14, 0
    %p94 = por %p92, %p93
    %s95 = ssub.s32 %s15, %s34
    %s96 = ssub.s32 %s16, %s30
    %s97 = sor.u32 %s95, %s96
    %p98 = scmp.eq.s32.totalorder %s97, 0
    %s100 = sadd.s32 %s99, 1
    %s101 = scalar_select %p98, %s99, %s100
    %p104 = pneg %p98
    %p105 = scmp.eq.s32.totalorder %s8, 1
    %p106 = por %p104, %p105
    %p107 = scmp.ne.s32.totalorder %s99, %s102
    %p108 = scmp.eq.s32.totalorder %s8, 0
    %p109 = por %p107, %p108
    %p110 = scmp.ne.s32.totalorder %s99, %s102
    %p111 = scmp.eq.s32.totalorder %s13, 1
    %p112 = por %p110, %p111
    %p113 = scmp.ne.s32.totalorder %s102, %s103
    %p114 = scmp.eq.s32.totalorder %s13, 0
    %p115 = por %p113, %p114
    %p116 = scmp.ne.s32.totalorder %s102, %s103
    %p117 = scmp.eq.s32.totalorder %s14, 1
    %p118 = por %p116, %p117
    %p120 = scmp.ne.s32.totalorder %s103, %s119
    %p121 = scmp.eq.s32.totalorder %s14, 0
    %p122 = por %p120, %p121
    %p123 = scmp.le.s32.totalorder 1, %s8
    %p124 = scmp.lt.s32.totalorder %s8, 3
    %p125 = pnand %p123, %p124
    %p126 = pneg %p125
    // Predicated region
    $region9: #{bce_iou_loss.1} parent=5 // pred_check
      _
    $region10: #{bce_iou_loss.1} parent=5 // pred_check_branch
      %128 = sbr.rel (%p125) target = $region12
    $region11: #{bce_iou_loss.1} parent=5 // pred_region
      %s129 = ssub.s32 %s8, 1
    $region12: #{bce_iou_loss.1} parent=5 // pred_fallthru
      _
    %p130 = scmp.lt.s32.totalorder %s8, 2
    // Predicated region
    $region13: #{bce_iou_loss.1} parent=5 // pred_check
      %p131 = pneg %p130
    $region14: #{bce_iou_loss.1} parent=5 // pred_check_branch
      %133 = sbr.rel (%p131) target = $region16
    $region15: #{bce_iou_loss.1} parent=5 // pred_region
      // Predicated region
      $region17: #{bce_iou_loss.1} parent=15 // pred_check
        %p134 = pneg %p51
      $region18: #{bce_iou_loss.1} parent=15 // pred_check_branch
        %136 = sbr.rel (%p134) target = $region20
      $region19: #{bce_iou_loss.1} parent=15 // pred_region
        %s137 = sadd.s32 %s16, %s17
        %p138 = scmp.lt.s32.totalorder %s15, 1
        %s139 = scalar_select %p138, %s15, 1
        %p140 = scmp.lt.s32.totalorder %s137, 0
        %s141 = scalar_select %p140, %s137, 0
        %s142 = sadd.s32 %s141, %s139
        %s143 = smul.addr %s142, 8
        %s144 = scalar_lea.vmem %s0, %s143
        %s145 = sadd.s32 %s16, %s17
      $region20: #{bce_iou_loss.1} parent=15 // pred_fallthru
        _
      // Predicated region
      $region21: #{bce_iou_loss.1} parent=15 // pred_check
        %p146 = pneg %p81
      $region22: #{bce_iou_loss.1} parent=15 // pred_check_branch
        %148 = sbr.rel (%p146) target = $region24
      $region23: #{bce_iou_loss.1} parent=15 // pred_region
        %s149 = sadd.s32 %s16, %s17
        %p150 = scmp.lt.s32.totalorder %s15, 1
        %s151 = scalar_select %p150, %s15, 1
        %p152 = scmp.lt.s32.totalorder %s149, 0
        %s153 = scalar_select %p152, %s149, 0
        %s154 = sadd.s32 %s153, %s151
        %s155 = smul.addr %s154, 8
        %s156 = scalar_lea.vmem %s1, %s155
        %s157 = sadd.s32 %s16, %s17
      $region24: #{bce_iou_loss.1} parent=15 // pred_fallthru
        _
    $region16: #{bce_iou_loss.1} parent=5 // pred_fallthru
      _
    %p158 = scmp.le.s32.totalorder 1, %s8
    %p159 = scmp.lt.s32.totalorder %s8, 3
    %p160 = pnand %p158, %p159
    %p161 = pneg %p160
    // Predicated region
    $region25: #{bce_iou_loss.1} parent=5 // pred_check
      _
    $region26: #{bce_iou_loss.1} parent=5 // pred_check_branch
      %163 = sbr.rel (%p160) target = $region28
    $region27: #{bce_iou_loss.1} parent=5 // pred_region
      %s164 = ssub.s32 %s8, 1
      %s165 = sadd.s32 %s19, %s20
      %p166 = scmp.lt.s32.totalorder %s18, 1
      %s167 = scalar_select %p166, %s18, 1
      %p168 = scmp.lt.s32.totalorder %s165, 0
      %s169 = scalar_select %p168, %s165, 0
      %s170 = sadd.s32 %s169, %s167
      %s171 = smul.addr %s170, 8
      %s172 = scalar_lea.vmem %s0, %s171
      %p173 = pneg %p57
      %p174 = pneg %p54
      %s175 = sadd.s32 %s19, %s20
      %p176 = scmp.lt.s32.totalorder %s18, 1
      %s177 = scalar_select %p176, %s18, 1
      %p178 = scmp.lt.s32.totalorder %s175, 0
      %s179 = scalar_select %p178, %s175, 0
      %s180 = sadd.s32 %s179, %s177
      %s181 = smul.addr %s180, 8
      %s182 = scalar_lea.vmem %s1, %s181
      %p183 = pneg %p87
      %p184 = pneg %p84
      %p185 = pneg %p115
      %p186 = pneg %p112
      %p187 = scmp.lt.s32.totalorder %s18, 1
      %s188 = scalar_select %p187, %s18, 1
      %p189 = scmp.lt.s32.totalorder %s19, 0
      %s190 = scalar_select %p189, %s19, 0
      %s191 = sadd.s32 %s190, %s188
      %s192 = smul.addr %s191, 8
      %s193 = scalar_lea.vmem %s2, %s192
      %s194 = sadd.s32 %s19, %s20
      %p195 = scmp.lt.s32.totalorder %s18, 1
      %s196 = scalar_select %p195, %s18, 1
      %p197 = scmp.lt.s32.totalorder %s194, 0
      %s198 = scalar_select %p197, %s194, 0
      %s199 = sadd.s32 %s198, %s196
      %s200 = smul.addr %s199, 8
      %s201 = scalar_lea.vmem %s0, %s200
      %s202 = sadd.s32 %s19, %s20
      %s203 = sadd.s32 %s19, %s20
      %p204 = scmp.lt.s32.totalorder %s18, 1
      %s205 = scalar_select %p204, %s18, 1
      %p206 = scmp.lt.s32.totalorder %s203, 0
      %s207 = scalar_select %p206, %s203, 0
      %s208 = sadd.s32 %s207, %s205
      %s209 = smul.addr %s208, 8
      %s210 = scalar_lea.vmem %s1, %s209
      %s211 = sadd.s32 %s19, %s20
      %p212 = scmp.lt.s32.totalorder %s18, 1
      %s213 = scalar_select %p212, %s18, 1
      %p214 = scmp.lt.s32.totalorder %s19, 0
      %s215 = scalar_select %p214, %s19, 0
      %s216 = sadd.s32 %s215, %s213
      %s217 = smul.addr %s216, 8
      %s218 = scalar_lea.vmem %s2, %s217
      %p219 = scmp.eq.s32.totalorder %s20, 0
      // Predicated region
      $region29: #{bce_iou_loss.1} parent=27 // pred_check
        %p220 = pneg %p219
      $region30: #{bce_iou_loss.1} parent=27 // pred_check_branch
        %222 = sbr.rel (%p220) target = $region32
      $region31: #{bce_iou_loss.1} parent=27 // pred_region
        %223 = vst [vmem:[%s218] sm:$0xff] 0.0
      $region32: #{bce_iou_loss.1} parent=27 // pred_fallthru
        _
      %v224 = vld [vmem:[%s201] sm:$0xff]
      %v225 = vld [vmem:[%s210] sm:$0xff]
      %v226 = vand.u32 2147483647, %v224
      %v227 = vsub.f32 0.0, %v226
      %v228 = vmul.f32 %v227, 1.442695
      %v229 = vpow.pop %v228
      %v230 = vmax.f32 %v224, 0.0
      %v231 = vmul.f32 %v224, %v225
      %v232 = vsub.f32 %v230, %v231
      %v233 = vadd.f32 %v229, 1.0
      %v234 = vlog2.pop %v233
      %v235 = vmul.f32 %v234, 0.6931472
      %v236 = vmul.f32 -0.5, %v229
      %v237 = vadd.f32 %v236, 1.0
      %v238 = vmul.f32 %v237, %v229
      %v239 = vand.u32 2147483647, %v229
      %vm240 = vcmp.lt.f32.partialorder %v239, 0.0004427343
      %v241 = vsel %vm240, %v238, %v235
      %v242 = vadd.f32 %v232, %v241
      %v243 = vadd.f32 %v229, 1.0
      %v244 = vrcp.pop %v243
      %v245 = vmul.f32 %v243, %v244
      %v246 = vsub.f32 2.0, %v245
      %v247 = vmul.f32 %v244, %v246
      %vm248 = vcmp.ge.f32.partialorder %v224, 0.0
      %v249 = vmul.f32 %v229, %v247
      %v250 = vsel %vm248, %v247, %v249
      %v251 = vrot.slane %v242, 4
      %v252 = vadd.f32 %v242, %v251
      %v253 = vrot.slane %v252, 2
      %v254 = vadd.f32 %v252, %v253
      %v255 = vrot.slane %v254, 1
      %v256 = vadd.f32 %v254, %v255
      %v257 = vadd.f32 %v256, 0.0
      %v258 = vmul.f32 %v250, %v225
      %v259 = vrot.slane %v258, 4
      %v260 = vadd.f32 %v258, %v259
      %v261 = vrot.slane %v260, 2
      %v262 = vadd.f32 %v260, %v261
      %v263 = vrot.slane %v262, 1
      %v264 = vadd.f32 %v262, %v263
      %v265 = vadd.f32 %v264, 0.0
      %v266 = vrot.slane %v250, 4
      %v267 = vadd.f32 %v250, %v266
      %v268 = vrot.slane %v267, 2
      %v269 = vadd.f32 %v267, %v268
      %v270 = vrot.slane %v269, 1
      %v271 = vadd.f32 %v269, %v270
      %v272 = vadd.f32 %v271, 0.0
      %v273 = vrot.slane %v225, 4
      %v274 = vadd.f32 %v225, %v273
      %v275 = vrot.slane %v274, 2
      %v276 = vadd.f32 %v274, %v275
      %v277 = vrot.slane %v276, 1
      %v278 = vadd.f32 %v276, %v277
      %v279 = vadd.f32 %v278, 0.0
      %v280 = vlaneseq
      %v281 = vshrl.u32 %v280, 7
      %vm282 = vcmp.eq.s32.totalorder %v281, 0
      %v283 = vsel %vm282, %v257, 0.0
      %vm284 = vcmp.eq.s32.totalorder %v281, 1
      %v285 = vsel %vm284, %v265, 0.0
      %v286 = vadd.f32 %v283, %v285
      %vm287 = vcmp.eq.s32.totalorder %v281, 2
      %v288 = vsel %vm287, %v272, 0.0
      %v289 = vadd.f32 %v286, %v288
      %vm290 = vcmp.eq.s32.totalorder %v281, 3
      %v291 = vsel %vm290, %v279, 0.0
      %v292 = vadd.f32 %v289, %v291
      %v293 = vld [vmem:[%s218] sm:$0xff]
      %v294 = vadd.f32 %v293, %v292
      %295 = vst [vmem:[%s218] sm:$0xff] %v294
      %p296 = scmp.lt.s32.totalorder %s18, 1
      %s297 = scalar_select %p296, %s18, 1
      %p298 = scmp.lt.s32.totalorder %s19, 0
      %s299 = scalar_select %p298, %s19, 0
      %s300 = sadd.s32 %s299, %s297
      %s301 = smul.addr %s300, 8
      %s302 = scalar_lea.vmem %s2, %s301
      // Predicated region
      $region33: #{bce_iou_loss.1} parent=27 // pred_check
        %p303 = pneg %p112
      $region34: #{bce_iou_loss.1} parent=27 // pred_check_branch
        %305 = sbr.rel (%p303) target = $region36
      $region35: #{bce_iou_loss.1} parent=27 // pred_region
        _
      $region36: #{bce_iou_loss.1} parent=27 // pred_fallthru
        _
    $region28: #{bce_iou_loss.1} parent=5 // pred_fallthru
      _
    %p306 = scmp.le.s32.totalorder 2, %s8
    // Predicated region
    $region37: #{bce_iou_loss.1} parent=5 // pred_check
      %p307 = pneg %p306
    $region38: #{bce_iou_loss.1} parent=5 // pred_check_branch
      %309 = sbr.rel (%p307) target = $region40
    $region39: #{bce_iou_loss.1} parent=5 // pred_region
      %s310 = ssub.s32 %s8, 2
      // Predicated region
      $region41: #{bce_iou_loss.1} parent=39 // pred_check
        %p311 = pneg %p118
      $region42: #{bce_iou_loss.1} parent=39 // pred_check_branch
        %313 = sbr.rel (%p311) target = $region44
      $region43: #{bce_iou_loss.1} parent=39 // pred_region
        %p314 = scmp.lt.s32.totalorder %s21, 1
        %s315 = scalar_select %p314, %s21, 1
        %p316 = scmp.lt.s32.totalorder %s22, 0
        %s317 = scalar_select %p316, %s22, 0
        %s318 = sadd.s32 %s317, %s315
        %s319 = smul.addr %s318, 8
        %s320 = scalar_lea.vmem %s2, %s319
      $region44: #{bce_iou_loss.1} parent=39 // pred_fallthru
        _
    $region40: #{bce_iou_loss.1} parent=5 // pred_fallthru
      _
  $region6: #{bce_iou_loss.1} parent=0 // loop_footer
    %s12 = sadd.s32 1, %s8
  $region7: #{bce_iou_loss.1} parent=0 // loop_footer_branch
    %7 = sbr.rel target = $region3
  $region8: #{bce_iou_loss.1} parent=0 // loop_exit
    _

</llo_original>
